<compile_context>
chip_gen: v6e
topology: v6e:2x2x1
jax: 0.10.0
libtpu: 0.0.40
codegen_flags: <defaults>
</compile_context>

<pallas_src>
import functools
import math

import jax
import jax.numpy as jnp
from jax import lax
from jax.experimental import pallas as pl
from jax.experimental.pallas import tpu as pltpu

_MiB = 1024 * 1024
# ~2-4 MiB input blocks sit at ~85%+ of HBM roofline while amortizing the
# ~0.35us per-grid-step overhead (measured tiled-copy data).
_INPUT_BLOCK_TARGET = 4 * _MiB


def _round_up(a: int, b: int) -> int:
    return ((a + b - 1) // b) * b


def _min_row_tile(itemsize: int) -> int:
    # Sub-32-bit dtypes pack along sublanes (bf16 vreg = [16,128], int8 = [32,128]).
    return {4: 8, 2: 16, 1: 32}.get(itemsize, 8)


def _vmem_limit_bytes() -> int:
    """Generation-aware scoped-VMEM limit: 96 MiB on 128-MiB parts (v5e/v6e),
    48 MiB on 64-MiB-per-TensorCore parts (v7x)."""
    try:
        phys = getattr(pltpu.get_tpu_info(), "vmem_capacity_bytes", None)
    except Exception:
        phys = None
    if phys is None:
        phys = 64 * _MiB  # conservative default: assume v7x per-TC VMEM
    return 96 * _MiB if phys >= 96 * _MiB else 48 * _MiB


def _max_block_bytes(itemsize: int, vmem_limit: int) -> int:
    """Largest single in/out block keeping (double-buffered in + out +
    ~2 f32-sized in-kernel temporaries) under the scoped-VMEM limit."""
    return vmem_limit // (4 + 8 // itemsize)


# --------------------------------------------------------------------------
# Kernels
# --------------------------------------------------------------------------
def _softmax_rows_kernel(x_ref, o_ref):
    # Block (tile_rows, D): softmax along the lane (last) axis.
    x = x_ref[...]
    m = jnp.max(x, axis=-1, keepdims=True)                 # exact in input dtype
    e = jnp.exp(x.astype(jnp.float32) - m.astype(jnp.float32))
    s = jnp.sum(e, axis=-1, keepdims=True)
    o_ref[...] = (e / s).astype(o_ref.dtype)               # exact divide (free: HBM-bound)


def _softmax_interior_kernel(x_ref, o_ref):
    # Block (tile_pre, D, tile_post): softmax along axis 1 (sublane axis).
    x = x_ref[...]
    m = jnp.max(x, axis=1, keepdims=True)
    e = jnp.exp(x.astype(jnp.float32) - m.astype(jnp.float32))
    s = jnp.sum(e, axis=1, keepdims=True)
    o_ref[...] = (e / s).astype(o_ref.dtype)


def _flash_stats_kernel(x_ref, m_ref, l_ref, *, d_total, tile_d):
    # Online running max / exp-sum along the tiled lane (reduction) axis.
    # m_ref / l_ref blocks are VMEM-resident accumulators across axis 1.
    j = pl.program_id(1)

    @pl.when(j == 0)
    def _():
        m_ref[...] = jnp.full(m_ref.shape, -jnp.inf, dtype=m_ref.dtype)
        l_ref[...] = jnp.zeros(l_ref.shape, dtype=l_ref.dtype)

    x = x_ref[...].astype(jnp.float32)
    col = j * tile_d + lax.broadcasted_iota(jnp.int32, x.shape, 1)
    x = jnp.where(col < d_total, x, -jnp.inf)              # mask ragged lane padding
    m_prev = m_ref[...]
    m_new = jnp.maximum(m_prev, jnp.max(x, axis=-1, keepdims=True))
    l_ref[...] = (l_ref[...] * jnp.exp(m_prev - m_new)
                  + jnp.sum(jnp.exp(x - m_new), axis=-1, keepdims=True))
    m_ref[...] = m_new


def _flash_norm_kernel(x_ref, m_ref, l_ref, o_ref):
    x = x_ref[...].astype(jnp.float32)
    e = jnp.exp(x - m_ref[...])
    o_ref[...] = (e / l_ref[...]).astype(o_ref.dtype)


# --------------------------------------------------------------------------
# Wrappers
# --------------------------------------------------------------------------
def _softmax_rows_flash(x2d, *, min_rows, vmem_limit, tile_d=None):
    """Two-pass online softmax for vocab-sized D (lane axis tiled)."""
    rows, D = x2d.shape
    dtype = x2d.dtype
    itemsize = dtype.itemsize
    tile_rows = rows if rows < min_rows else min_rows
    if tile_d is None:
        tile_d = (_INPUT_BLOCK_TARGET // max(tile_rows * itemsize, 1)) // 128 * 128
        tile_d = max(128, min(tile_d, _round_up(D, 128)))
    grid = (pl.cdiv(rows, tile_rows), pl.cdiv(D, tile_d))

    x_spec = pl.BlockSpec((tile_rows, tile_d), lambda i, j: (i, j))
    stat_spec = pl.BlockSpec((tile_rows, 1), lambda i, j: (i, 0))

    m, l = pl.pallas_call(
        functools.partial(_flash_stats_kernel, d_total=D, tile_d=tile_d),
        out_shape=(jax.ShapeDtypeStruct((rows, 1), jnp.float32),
                   jax.ShapeDtypeStruct((rows, 1), jnp.float32)),
        grid_spec=pltpu.PrefetchScalarGridSpec(
            num_scalar_prefetch=0, grid=grid,
            in_specs=[x_spec],
            out_specs=(stat_spec, stat_spec)),
        compiler_params=pltpu.CompilerParams(
            dimension_semantics=("parallel", "arbitrary"),
            vmem_limit_bytes=vmem_limit),
    )(x2d)

    return pl.pallas_call(
        _flash_norm_kernel,
        out_shape=jax.ShapeDtypeStruct((rows, D), dtype),
        grid_spec=pltpu.PrefetchScalarGridSpec(
            num_scalar_prefetch=0, grid=grid,
            in_specs=[x_spec, stat_spec, stat_spec],
            out_specs=x_spec),
        compiler_params=pltpu.CompilerParams(
            dimension_semantics=("parallel", "parallel"),
            vmem_limit_bytes=vmem_limit),
    )(x2d, m, l)


def _softmax_rows(x2d):
    rows, D = x2d.shape
    itemsize = x2d.dtype.itemsize
    min_rows = _min_row_tile(itemsize)
    vmem_limit = _vmem_limit_bytes()
    max_block = _max_block_bytes(itemsize, vmem_limit)
    row_bytes = D * itemsize

    if min(rows, min_rows) * row_bytes > max_block:
        # Even the minimum row tile busts VMEM -> online (flash) softmax.
        return _softmax_rows_flash(x2d, min_rows=min_rows, vmem_limit=vmem_limit)

    # Byte-based row tile targeting ~4 MiB input blocks, while keeping >= ~4
    # grid steps when rows allow (per-TC double buffering + megacore sharding).
    if rows <= min_rows:
        tile_rows = rows
    else:
        cap = max(min_rows,
                  (_INPUT_BLOCK_TARGET // max(row_bytes, 1)) // min_rows * min_rows)
        desired_steps = min(4, pl.cdiv(rows, min_rows))
        tile_rows = _round_up(pl.cdiv(rows, desired_steps), min_rows)
        tile_rows = max(min_rows, min(tile_rows, cap))

    grid = (pl.cdiv(rows, tile_rows),)
    return pl.pallas_call(
        _softmax_rows_kernel,
        out_shape=jax.ShapeDtypeStruct((rows, D), x2d.dtype),
        grid_spec=pltpu.PrefetchScalarGridSpec(
            num_scalar_prefetch=0, grid=grid,
            in_specs=[pl.BlockSpec((tile_rows, D), lambda i: (i, 0))],
            out_specs=pl.BlockSpec((tile_rows, D), lambda i: (i, 0))),
        compiler_params=pltpu.CompilerParams(
            dimension_semantics=("parallel",), vmem_limit_bytes=vmem_limit),
    )(x2d)


def _softmax_lastdim(x):
    D = x.shape[-1]
    rows = math.prod(x.shape[:-1])
    return _softmax_rows(x.reshape(rows, D)).reshape(x.shape)


def _softmax_interior(x3d, vmem_limit):
    pre, D, post = x3d.shape
    itemsize = x3d.dtype.itemsize

    tile_post = (_INPUT_BLOCK_TARGET // max(D * itemsize, 1)) // 128 * 128
    tile_post = max(128, min(tile_post, _round_up(post, 128)))
    tile_pre = max(1, _INPUT_BLOCK_TARGET // max(D * tile_post * itemsize, 1))
    tile_pre = min(tile_pre, pre)

    # Encourage >= 4 total grid steps (pipelining within each TC + megacore).
    while pl.cdiv(pre, tile_pre) * pl.cdiv(post, tile_post) < 4:
        if tile_post > 128:
            tile_post = max(128, _round_up(tile_post // 2, 128))
        elif tile_pre > 1:
            tile_pre = max(1, tile_pre // 2)
        else:
            break

    grid = (pl.cdiv(pre, tile_pre), pl.cdiv(post, tile_post))
    spec = pl.BlockSpec((tile_pre, D, tile_post), lambda i, j: (i, 0, j))
    return pl.pallas_call(
        _softmax_interior_kernel,
        out_shape=jax.ShapeDtypeStruct((pre, D, post), x3d.dtype),
        grid_spec=pltpu.PrefetchScalarGridSpec(
            num_scalar_prefetch=0, grid=grid, in_specs=[spec], out_specs=spec),
        compiler_params=pltpu.CompilerParams(
            dimension_semantics=("parallel", "parallel"),
            vmem_limit_bytes=vmem_limit),
    )(x3d)


def pallas_softmax(x: jax.Array, dim: int) -> jax.Array:
    """Softmax along `dim`, matching torch semantics (keepdim reductions)."""
    ndim = x.ndim
    dim = dim % ndim

    if dim == ndim - 1:
        return _softmax_lastdim(x)

    D = x.shape[dim]
    pre = math.prod(x.shape[:dim])
    post = math.prod(x.shape[dim + 1:])
    itemsize = x.dtype.itemsize
    vmem_limit = _vmem_limit_bytes()
    max_block = _max_block_bytes(itemsize, vmem_limit)

    # Lane-sparse post (<128 lanes -> masked vst partial stores) or an
    # unbounded minimum (1, D, 128) block: pay one transpose pass and use the
    # lane-reduction path (which also has the online-softmax fallback).
    if post < 128 or D * 128 * itemsize > max_block:
        xt = jnp.moveaxis(x, dim, -1)
        return jnp.moveaxis(_softmax_lastdim(xt), -1, dim)

    out3d = _softmax_interior(x.reshape(pre, D, post), vmem_limit)
    return out3d.reshape(x.shape)


if __name__ == "__main__":
    key = jax.random.PRNGKey(0)
    x = jax.random.normal(key, (2, 4, 16, 16), dtype=jnp.float32)

    # 1) softmax over last dim (lane-reduction path, byte-based row tiles)
    out_last = pallas_softmax(x, dim=-1)
    jax.block_until_ready(out_last)
    assert jnp.allclose(out_last, jax.nn.softmax(x, axis=-1), atol=1e-4, rtol=1e-4)
    assert jnp.allclose(jnp.sum(out_last, axis=-1), 1.0, atol=1e-4)

    # 2) interior dim with post >= 128 (transpose-free sublane-reduction path)
    out_d1 = pallas_softmax(x, dim=1)
    jax.block_until_ready(out_d1)
    assert jnp.allclose(out_d1, jax.nn.softmax(x, axis=1), atol=1e-4, rtol=1e-4)

    # 3) interior dim with post < 128 (moveaxis + lane-reduction dispatch)
    out_d2 = pallas_softmax(x, dim=2)
    jax.block_until_ready(out_d2)
    assert jnp.allclose(out_d2, jax.nn.softmax(x, axis=2), atol=1e-4, rtol=1e-4)

    # 4) bf16 input (dtype-aware sublane tiling, f32 exp/normalize internally)
    xb = x.astype(jnp.bfloat16)
    out_b = pallas_softmax(xb, dim=-1)
    jax.block_until_ready(out_b)
    ref_b = jax.nn.softmax(xb.astype(jnp.float32), axis=-1)
    assert jnp.allclose(out_b.astype(jnp.float32), ref_b, atol=1e-2, rtol=1e-2)

    # 5) exercise the online (flash) fallback kernels at a small size with a
    #    forced 128-wide lane tile so multiple reduction steps actually run.
    xf = jax.random.normal(jax.random.PRNGKey(1), (16, 384), dtype=jnp.float32)
    out_f = _softmax_rows_flash(xf, min_rows=8, vmem_limit=48 * _MiB, tile_d=128)
    jax.block_until_ready(out_f)
    assert jnp.allclose(out_f, jax.nn.softmax(xf, axis=-1), atol=1e-4, rtol=1e-4)

    print("KERNEL_OK")
</pallas_src>

<mosaic_0001>
module attributes {stable_mosaic.version = 11 : i64} {
  func.func @_softmax_rows_kernel(%arg0: i32, %arg1: memref<32x16xf32, #tpu.memory_space<vmem>>, %arg2: memref<32x16xf32, #tpu.memory_space<vmem>>) attributes {dimension_semantics = [#tpu.dimension_semantics<parallel>], iteration_bounds = array<i64: 4>, scalar_prefetch = 0 : i64, scratch_operands = 0 : i64, tpu.core_type = #tpu.core_type<tc>, window_params = [{transform_indices = @transform_0, window_bounds = array<i64: 32, 16>}, {transform_indices = @transform_1, window_bounds = array<i64: 32, 16>}]} {
    %c0 = arith.constant 0 : index
    %c0_0 = arith.constant 0 : index
    %0 = vector.load %arg1[%c0, %c0_0] : memref<32x16xf32, #tpu.memory_space<vmem>>, vector<32x16xf32>
    %cst = arith.constant dense<0xFF800000> : vector<32xf32>
    %1 = vector.multi_reduction <maximumf>, %0, %cst [1] : vector<32x16xf32> to vector<32xf32>
    %2 = vector.shape_cast %1 : vector<32xf32> to vector<32x1xf32>
    %3 = vector.broadcast %2 : vector<32x1xf32> to vector<32x16xf32>
    %4 = arith.subf %0, %3 : vector<32x16xf32>
    %5 = math.exp %4 : vector<32x16xf32>
    %cst_1 = arith.constant dense<0.000000e+00> : vector<32xf32>
    %6 = vector.multi_reduction <add>, %5, %cst_1 [1] : vector<32x16xf32> to vector<32xf32>
    %7 = vector.shape_cast %6 : vector<32xf32> to vector<32x1xf32>
    %8 = vector.broadcast %7 : vector<32x1xf32> to vector<32x16xf32>
    %9 = arith.divf %5, %8 : vector<32x16xf32>
    %c0_2 = arith.constant 0 : index
    %c0_3 = arith.constant 0 : index
    %10 = vector.load %arg2[%c0_2, %c0_3] : memref<32x16xf32, #tpu.memory_space<vmem>>, vector<32x16xf32>
    tpu.vector_store %arg2[%c0_2, %c0_3], %9 {strides = array<i32>} : memref<32x16xf32, #tpu.memory_space<vmem>>, vector<32x16xf32>,
    return
  }
  func.func @transform_0(%arg0: i32) -> (i32, i32) {
    %c0_i32 = arith.constant 0 : i32
    %c0_i32_0 = arith.constant 0 : i32
    return %arg0, %c0_i32 : i32, i32
  }
  func.func @transform_1(%arg0: i32) -> (i32, i32) {
    %c0_i32 = arith.constant 0 : i32
    %c0_i32_0 = arith.constant 0 : i32
    return %arg0, %c0_i32 : i32, i32
  }
}

</mosaic_0001>

<llo_original>
// kernel: tpu_custom_call.1
$region0: #{tpu_custom_call.1}
  #allocation0 [shape = 'u32[]', space=smem, size = 0x4, offset = 0x4, fixed_abs, tag = 'smem constant byte address 0x4 - core index']
  #allocation1 [shape = 'u32[144,128]{1,0:T(1,128)}', space=vmem, size = 0x12000, scoped, tag = 'internal scratch']
  %s0 = inlined_call_operand.vmem [shape: f32[128,16], index: 0, kind: input, shape index: {}]
  %s1 = inlined_call_operand.vmem [shape: f32[128,16], index: 1, kind: output, shape index: {}]
  %s2 = sld [smem:[#allocation0]]
  $region37: #{tpu_custom_call.1} parent=0
    _
  %s4 = ssub.s32 1, %s2
  %s5 = scalar_select 0, %s4, %s2
  loop: start=0, step=1, limit=6
  $region2: #{tpu_custom_call.1} parent=0 // loop_pre_header
    _
  $region3: #{tpu_custom_call.1} parent=0 // loop_header
    %s7 = sphi 0, %s11
    %p8 = scmp.ge.s32.totalorder %s7, 6
    %s17 = sphi 0, %s19
    %s20 = sphi 0, %s17
    %s21 = sphi 0, %s20
    %s37 = sphi 0, %s21
    %s43 = sphi 0, %s45
    %s46 = sphi 0, %s43
    %s47 = sphi 0, %s46
    %s63 = sphi 0, %s47
  $region4: #{tpu_custom_call.1} parent=0 // loop_header_branch
    %10 = sbr.rel (%p8) target = $region8
  $region5: #{tpu_custom_call.1} parent=0 // loop_body
    %s12 = ssub.s32 %s7, 1
    %s13 = ssub.s32 %s7, 2
    %s14 = sadd.s32 %s7, 1
    %s15 = ssub.s32 %s7, %s14
    %p16 = scmp.eq.s32.totalorder %s15, 0
    %s18 = sadd.s32 %s17, 1
    %s19 = scalar_select %p16, %s17, %s18
    %p22 = pneg %p16
    %p23 = scmp.eq.s32.totalorder %s7, 3
    %p24 = por %p22, %p23
    %p25 = scmp.ne.s32.totalorder %s17, %s20
    %p26 = scmp.eq.s32.totalorder %s7, 0
    %p27 = por %p25, %p26
    %p28 = scmp.ne.s32.totalorder %s17, %s20
    %p29 = scmp.eq.s32.totalorder %s12, 3
    %p30 = por %p28, %p29
    %p31 = scmp.ne.s32.totalorder %s20, %s21
    %p32 = scmp.eq.s32.totalorder %s12, 0
    %p33 = por %p31, %p32
    %p34 = scmp.ne.s32.totalorder %s20, %s21
    %p35 = scmp.eq.s32.totalorder %s13, 3
    %p36 = por %p34, %p35
    %p38 = scmp.ne.s32.totalorder %s21, %s37
    %p39 = scmp.eq.s32.totalorder %s13, 0
    %p40 = por %p38, %p39
    %s41 = ssub.s32 %s7, %s14
    %p42 = scmp.eq.s32.totalorder %s41, 0
    %s44 = sadd.s32 %s43, 1
    %s45 = scalar_select %p42, %s43, %s44
    %p48 = pneg %p42
    %p49 = scmp.eq.s32.totalorder %s7, 3
    %p50 = por %p48, %p49
    %p51 = scmp.ne.s32.totalorder %s43, %s46
    %p52 = scmp.eq.s32.totalorder %s7, 0
    %p53 = por %p51, %p52
    %p54 = scmp.ne.s32.totalorder %s43, %s46
    %p55 = scmp.eq.s32.totalorder %s12, 3
    %p56 = por %p54, %p55
    %p57 = scmp.ne.s32.totalorder %s46, %s47
    %p58 = scmp.eq.s32.totalorder %s12, 0
    %p59 = por %p57, %p58
    %p60 = scmp.ne.s32.totalorder %s46, %s47
    %p61 = scmp.eq.s32.totalorder %s13, 3
    %p62 = por %p60, %p61
    %p64 = scmp.ne.s32.totalorder %s47, %s63
    %p65 = scmp.eq.s32.totalorder %s13, 0
    %p66 = por %p64, %p65
    %p67 = scmp.le.s32.totalorder 1, %s7
    %p68 = scmp.lt.s32.totalorder %s7, 5
    %p69 = pnand %p67, %p68
    %p70 = pneg %p69
    // Predicated region
    $region9: #{tpu_custom_call.1} parent=5 // pred_check
      _
    $region10: #{tpu_custom_call.1} parent=5 // pred_check_branch
      %72 = sbr.rel (%p69) target = $region12
    $region11: #{tpu_custom_call.1} parent=5 // pred_region
      %s73 = ssub.s32 %s7, 1
    $region12: #{tpu_custom_call.1} parent=5 // pred_fallthru
      _
    %p74 = scmp.lt.s32.totalorder %s7, 4
    // Predicated region
    $region13: #{tpu_custom_call.1} parent=5 // pred_check
      %p75 = pneg %p74
    $region14: #{tpu_custom_call.1} parent=5 // pred_check_branch
      %77 = sbr.rel (%p75) target = $region16
    $region15: #{tpu_custom_call.1} parent=5 // pred_region
      // Predicated region
      $region17: #{tpu_custom_call.1} parent=15 // pred_check
        %p78 = pneg %p27
      $region18: #{tpu_custom_call.1} parent=15 // pred_check_branch
        %80 = sbr.rel (%p78) target = $region20
      $region19: #{tpu_custom_call.1} parent=15 // pred_region
        %s81 = smul.u32 4, %s7
        %p82 = scmp.lt.s32.totalorder %s81, 15
        %s83 = scalar_select %p82, %s81, 15
        %s84 = smul.addr %s83, 8
        %s85 = scalar_lea.vmem %s0, %s84
        %s86 = smul.u32 4, %s7
      $region20: #{tpu_custom_call.1} parent=15 // pred_fallthru
        _
    $region16: #{tpu_custom_call.1} parent=5 // pred_fallthru
      _
    %p87 = scmp.le.s32.totalorder 1, %s7
    %p88 = scmp.lt.s32.totalorder %s7, 5
    %p89 = pnand %p87, %p88
    %p90 = pneg %p89
    // Predicated region
    $region21: #{tpu_custom_call.1} parent=5 // pred_check
      _
    $region22: #{tpu_custom_call.1} parent=5 // pred_check_branch
      %92 = sbr.rel (%p89) target = $region24
    $region23: #{tpu_custom_call.1} parent=5 // pred_region
      %s93 = ssub.s32 %s7, 1
      %s94 = smul.u32 4, %s12
      %p95 = scmp.lt.s32.totalorder %s94, 15
      %s96 = scalar_select %p95, %s94, 15
      %s97 = smul.addr %s96, 8
      %s98 = scalar_lea.vmem %s0, %s97
      %p99 = pneg %p33
      %p100 = pneg %p30
      %p101 = pneg %p59
      %p102 = pneg %p56
      %s103 = smul.u32 4, %s12
      %p104 = scmp.lt.s32.totalorder %s103, 15
      %s105 = scalar_select %p104, %s103, 15
      %s106 = smul.addr %s105, 8
      %s107 = scalar_lea.vmem %s1, %s106
      %s108 = smul.u32 4, %s12
      %p109 = scmp.lt.s32.totalorder %s108, 15
      %s110 = scalar_select %p109, %s108, 15
      %s111 = smul.addr %s110, 8
      %s112 = scalar_lea.vmem %s0, %s111
      %s113 = smul.u32 4, %s12
      %s114 = smul.u32 4, %s12
      %p115 = scmp.lt.s32.totalorder %s114, 15
      %s116 = scalar_select %p115, %s114, 15
      %s117 = smul.addr %s116, 8
      %s118 = scalar_lea.vmem %s1, %s117
      %s119 = smul.u32 4, %s12
      %v120 = vld [vmem:[%s112] sm:$0xff]
      %v121 = vld [vmem:[%s112 + $0x8] sm:$0xff]
      %v122 = vld [vmem:[%s112 + $0x10] sm:$0xff]
      %v123 = vld [vmem:[%s112 + $0x18] sm:$0xff]
      %vm124 = vcmask 130048
      %v125 = vsel %vm124, %v120, -inf
      %126 = vmax.xlane.f32.xlu0 %v125
      %v127 = vpop.xlane.xlu0 %126
      %v128 = vsel %vm124, %v121, -inf
      %129 = vmax.xlane.f32.xlu0 %v128
      %v130 = vpop.xlane.xlu0 %129
      %v131 = vsel %vm124, %v122, -inf
      %132 = vmax.xlane.f32.xlu0 %v131
      %v133 = vpop.xlane.xlu0 %132
      %v134 = vsel %vm124, %v123, -inf
      %135 = vmax.xlane.f32.xlu0 %v134
      %v136 = vpop.xlane.xlu0 %135
      %v137 = vsub.f32 %v120, %v127
      %v138 = vsub.f32 %v121, %v130
      %v139 = vsub.f32 %v122, %v133
      %v140 = vsub.f32 %v123, %v136
      %v141 = vmul.f32 %v137, 1.442695
      %v142 = vpow.pop %v141
      %v143 = vmul.f32 %v138, 1.442695
      %v144 = vpow.pop %v143
      %v145 = vmul.f32 %v139, 1.442695
      %v146 = vpow.pop %v145
      %v147 = vmul.f32 %v140, 1.442695
      %v148 = vpow.pop %v147
      %v149 = vsel %vm124, %v142, 0.0
      %150 = vadd.xlane.f32.xlu0 %v149
      %v151 = vpop.xlane.xlu0 %150
      %v152 = vsel %vm124, %v144, 0.0
      %153 = vadd.xlane.f32.xlu0 %v152
      %v154 = vpop.xlane.xlu0 %153
      %v155 = vsel %vm124, %v146, 0.0
      %156 = vadd.xlane.f32.xlu0 %v155
      %v157 = vpop.xlane.xlu0 %156
      %v158 = vsel %vm124, %v148, 0.0
      %159 = vadd.xlane.f32.xlu0 %v158
      %v160 = vpop.xlane.xlu0 %159
      %v161 = vrcp.pop %v151
      %v162 = vmul.f32 %v142, %v161
      %v163 = vrcp.pop %v154
      %v164 = vmul.f32 %v144, %v163
      %v165 = vrcp.pop %v157
      %v166 = vmul.f32 %v146, %v165
      %v167 = vrcp.pop %v160
      %v168 = vmul.f32 %v148, %v167
      %169 = vst.msk [vmem:[%s118] sm:$0xff] %vm124, %v162
      %170 = vst.msk [vmem:[%s118 + $0x8] sm:$0xff] %vm124, %v164
      %171 = vst.msk [vmem:[%s118 + $0x10] sm:$0xff] %vm124, %v166
      %172 = vst.msk [vmem:[%s118 + $0x18] sm:$0xff] %vm124, %v168
      %s173 = smul.u32 4, %s12
      %p174 = scmp.lt.s32.totalorder %s173, 15
      %s175 = scalar_select %p174, %s173, 15
      %s176 = smul.addr %s175, 8
      %s177 = scalar_lea.vmem %s1, %s176
      // Predicated region
      $region25: #{tpu_custom_call.1} parent=23 // pred_check
        %p178 = pneg %p56
      $region26: #{tpu_custom_call.1} parent=23 // pred_check_branch
        %180 = sbr.rel (%p178) target = $region28
      $region27: #{tpu_custom_call.1} parent=23 // pred_region
        %s181 = smul.u32 4, %s12
      $region28: #{tpu_custom_call.1} parent=23 // pred_fallthru
        _
    $region24: #{tpu_custom_call.1} parent=5 // pred_fallthru
      _
    %p182 = scmp.le.s32.totalorder 2, %s7
    // Predicated region
    $region29: #{tpu_custom_call.1} parent=5 // pred_check
      %p183 = pneg %p182
    $region30: #{tpu_custom_call.1} parent=5 // pred_check_branch
      %185 = sbr.rel (%p183) target = $region32
    $region31: #{tpu_custom_call.1} parent=5 // pred_region
      %s186 = ssub.s32 %s7, 2
      // Predicated region
      $region33: #{tpu_custom_call.1} parent=31 // pred_check
        %p187 = pneg %p62
      $region34: #{tpu_custom_call.1} parent=31 // pred_check_branch
        %189 = sbr.rel (%p187) target = $region36
      $region35: #{tpu_custom_call.1} parent=31 // pred_region
        %s190 = smul.u32 4, %s13
        %p191 = scmp.lt.s32.totalorder %s190, 15
        %s192 = scalar_select %p191, %s190, 15
        %s193 = smul.addr %s192, 8
        %s194 = scalar_lea.vmem %s1, %s193
      $region36: #{tpu_custom_call.1} parent=31 // pred_fallthru
        _
    $region32: #{tpu_custom_call.1} parent=5 // pred_fallthru
      _
  $region6: #{tpu_custom_call.1} parent=0 // loop_footer
    %s11 = sadd.s32 1, %s7
  $region7: #{tpu_custom_call.1} parent=0 // loop_footer_branch
    %6 = sbr.rel target = $region3
  $region8: #{tpu_custom_call.1} parent=0 // loop_exit
    _

</llo_original>
